<compile_context>
chip_gen: v6e
topology: v6e:2x2x1
jax: 0.10.0
libtpu: 0.0.40
codegen_flags: <defaults>
</compile_context>

<pallas_src>
import math
import functools

import jax
import jax.numpy as jnp
from jax import lax
from jax.experimental import pallas as pl
from jax.experimental.pallas import tpu as pltpu


def _cross_attn_kernel(q_ref, kv_ref, wq_ref, wk_ref, wv_ref, wo_ref, o_ref,
                       *, bblk, lq, lkv, nxheads, dqk, dv):
    # q_ref:  (bblk*lq,  Dlat)        bf16
    # kv_ref: (bblk*lkv, Din)         bf16
    # wq_ref: (Dlat, qk_channels)     bf16  (1/sqrt(dqk) already folded in)
    # wk_ref: (Din,  qk_channels)     bf16
    # wv_ref: (Din,  v_channels)      bf16
    # wo_ref: (v_channels, out_ch)    bf16
    # o_ref:  (bblk*lq, out_ch)       output dtype
    out_ch = o_ref.shape[-1]

    # Projections: big-M MXU matmuls over the whole batch block, f32 accumulation.
    Q = jnp.dot(q_ref[...], wq_ref[...],
                preferred_element_type=jnp.float32).astype(jnp.bfloat16)
    K = jnp.dot(kv_ref[...], wk_ref[...],
                preferred_element_type=jnp.float32).astype(jnp.bfloat16)
    V = jnp.dot(kv_ref[...], wv_ref[...],
                preferred_element_type=jnp.float32).astype(jnp.bfloat16)
    wo = wo_ref[...]  # hoisted, reused per head

    # Contract trailing dim of both operands (Q @ K^T without materializing K^T).
    dn_nt = (((1,), (1,)), ((), ()))

    for b in range(bblk):          # static unroll: per-batch attention
        Qb = Q[b * lq:(b + 1) * lq, :]          # sublane row slices (cheap)
        Kb = K[b * lkv:(b + 1) * lkv, :]
        Vb = V[b * lkv:(b + 1) * lkv, :]
        acc = jnp.zeros((lq, out_ch), jnp.float32)
        for h in range(nxheads):   # static unroll over heads
            Qh = Qb[:, h * dqk:(h + 1) * dqk]   # (lq,  dqk)
            Kh = Kb[:, h * dqk:(h + 1) * dqk]   # (lkv, dqk)
            Vh = Vb[:, h * dv:(h + 1) * dv]     # (lkv, dv)

            s = lax.dot_general(Qh, Kh, dn_nt,
                                preferred_element_type=jnp.float32)  # (lq, lkv), pre-scaled
            # numerically-stable softmax in f32
            s = s - jnp.max(s, axis=-1, keepdims=True)
            p = jnp.exp(s)
            p = p * pl.reciprocal(jnp.sum(p, axis=-1, keepdims=True), approx=True)

            oh = jnp.dot(p.astype(jnp.bfloat16), Vh,
                         preferred_element_type=jnp.float32)         # (lq, dv)
            # accumulate output projection per head; W_O sliced on its sublane axis
            acc = acc + jnp.dot(oh.astype(jnp.bfloat16),
                                wo[h * dv:(h + 1) * dv, :],
                                preferred_element_type=jnp.float32)
        o_ref[b * lq:(b + 1) * lq, :] = acc.astype(o_ref.dtype)


def _pick_bblk(batch, lq, lkv, max_rows=2048):
    """Largest divisor of `batch` keeping projection row-counts bounded."""
    best = 1
    for c in range(1, batch + 1):
        if batch % c == 0 and c * max(lq, lkv) <= max_rows:
            best = c
    return best


def cross_attention(latent_q, input_kv, w_q, w_k, w_v, w_o, *, nxheads,
                    bblk=None, vmem_limit_bytes=None):
    """Pallas CrossAttention forward.

    latent_q: (B, Lq,  latent_channels)
    input_kv: (B, Lkv, in_channels)
    w_q: (qk_channels, latent_channels)   -- PyTorch nn.Linear layout
    w_k: (qk_channels, in_channels)
    w_v: (v_channels,  in_channels)
    w_o: (out_channels, v_channels)
    returns: (B, Lq, out_channels)
    """
    B, Lq, Dlat = latent_q.shape
    Bk, Lkv, Din = input_kv.shape
    assert Bk == B
    qk_channels = w_q.shape[0]
    v_channels = w_v.shape[0]
    out_channels = w_o.shape[0]
    assert qk_channels % nxheads == 0 and v_channels % nxheads == 0
    dqk = qk_channels // nxheads
    dv = v_channels // nxheads

    if bblk is None:
        bblk = _pick_bblk(B, Lq, Lkv)
    assert B % bblk == 0
    grid = (B // bblk,)

    # Wrapper-side glue: transpose weights to (in, out), fold the softmax scale into
    # W_Q, cast matmul operands to bf16 (halves HBM traffic; f32 accumulation in-kernel).
    scale = 1.0 / math.sqrt(dqk)
    cdt = jnp.bfloat16
    wq_t = (w_q.T * scale).astype(cdt)   # (Dlat, qk)
    wk_t = w_k.T.astype(cdt)             # (Din,  qk)
    wv_t = w_v.T.astype(cdt)             # (Din,  v)
    wo_t = w_o.T.astype(cdt)             # (v,    out)
    q2 = latent_q.reshape(B * Lq, Dlat).astype(cdt)
    kv2 = input_kv.reshape(B * Lkv, Din).astype(cdt)

    kernel = functools.partial(_cross_attn_kernel, bblk=bblk, lq=Lq, lkv=Lkv,
                               nxheads=nxheads, dqk=dqk, dv=dv)

    out_flat = pl.pallas_call(
        kernel,
        out_shape=jax.ShapeDtypeStruct((B * Lq, out_channels), latent_q.dtype),
        grid=grid,
        in_specs=[
            pl.BlockSpec((bblk * Lq, Dlat), lambda b: (b, 0)),
            pl.BlockSpec((bblk * Lkv, Din), lambda b: (b, 0)),
            pl.BlockSpec((Dlat, qk_channels), lambda b: (0, 0)),
            pl.BlockSpec((Din, qk_channels), lambda b: (0, 0)),
            pl.BlockSpec((Din, v_channels), lambda b: (0, 0)),
            pl.BlockSpec((v_channels, out_channels), lambda b: (0, 0)),
        ],
        out_specs=pl.BlockSpec((bblk * Lq, out_channels), lambda b: (b, 0)),
        compiler_params=pltpu.CompilerParams(
            dimension_semantics=("parallel",),
            vmem_limit_bytes=vmem_limit_bytes),
    )(q2, kv2, wq_t, wk_t, wv_t, wo_t)

    return out_flat.reshape(B, Lq, out_channels)


def cross_attention_ref(latent_q, input_kv, w_q, w_k, w_v, w_o, *, nxheads):
    """Pure-JAX f32 reference matching the PyTorch forward exactly."""
    B, Lq, _ = latent_q.shape
    _, Lkv, _ = input_kv.shape
    qk_channels = w_q.shape[0]
    v_channels = w_v.shape[0]
    dqk = qk_channels // nxheads
    dv = v_channels // nxheads
    Q = (latent_q @ w_q.T).reshape(B, Lq, nxheads, dqk).transpose(0, 2, 1, 3)
    K = (input_kv @ w_k.T).reshape(B, Lkv, nxheads, dqk).transpose(0, 2, 1, 3)
    V = (input_kv @ w_v.T).reshape(B, Lkv, nxheads, dv).transpose(0, 2, 1, 3)
    attn = (Q @ jnp.swapaxes(K, -2, -1)) / math.sqrt(dqk)
    attn = jax.nn.softmax(attn, axis=-1)
    out = attn @ V
    out = out.transpose(0, 2, 1, 3).reshape(B, Lq, v_channels)
    return out @ w_o.T


if __name__ == "__main__":
    # Small deterministic config consistent with the module defaults.
    B = 2
    latent_seq_len = 8
    input_seq_len = 16
    latent_channels = 32
    in_channels = 16
    nxheads = 2
    qk_channels = latent_channels    # default: qk_channels = latent_channels
    v_channels = qk_channels         # default
    out_channels = latent_channels   # default

    key = jax.random.PRNGKey(0)
    k1, k2, k3, k4, k5, k6 = jax.random.split(key, 6)

    latent_q = jax.random.normal(k1, (B, latent_seq_len, latent_channels), jnp.float32)
    input_kv = jax.random.normal(k2, (B, input_seq_len, in_channels), jnp.float32)

    # nn.Linear(in, out, bias=False) weight shape: (out, in).
    def init_linear(k, out_f, in_f):
        bound = 1.0 / math.sqrt(in_f)
        return jax.random.uniform(k, (out_f, in_f), jnp.float32, -bound, bound)

    w_q = init_linear(k3, qk_channels, latent_channels)
    w_k = init_linear(k4, qk_channels, in_channels)
    w_v = init_linear(k5, v_channels, in_channels)
    w_o = init_linear(k6, out_channels, v_channels)

    out = cross_attention(latent_q, input_kv, w_q, w_k, w_v, w_o, nxheads=nxheads)
    out = jax.block_until_ready(out)

    ref = cross_attention_ref(latent_q, input_kv, w_q, w_k, w_v, w_o, nxheads=nxheads)
    assert out.shape == (B, latent_seq_len, out_channels)
    # bf16 matmul operands (f32 accumulation) + approx reciprocal -> looser tolerance
    # vs the pure-f32 reference.
    assert jnp.allclose(out, ref, atol=2e-2, rtol=2e-2), "mismatch vs reference"

    print("KERNEL_OK")
</pallas_src>

<mosaic_0001>
module attributes {stable_mosaic.version = 11 : i64} {
  func.func @_cross_attn_kernel(%arg0: i32, %arg1: memref<16x32xbf16, #tpu.memory_space<vmem>>, %arg2: memref<32x16xbf16, #tpu.memory_space<vmem>>, %arg3: memref<32x32xbf16, #tpu.memory_space<vmem>>, %arg4: memref<16x32xbf16, #tpu.memory_space<vmem>>, %arg5: memref<16x32xbf16, #tpu.memory_space<vmem>>, %arg6: memref<32x32xbf16, #tpu.memory_space<vmem>>, %arg7: memref<16x32xf32, #tpu.memory_space<vmem>>) attributes {dimension_semantics = [#tpu.dimension_semantics<parallel>], iteration_bounds = array<i64: 1>, scalar_prefetch = 0 : i64, scratch_operands = 0 : i64, tpu.core_type = #tpu.core_type<tc>, window_params = [{transform_indices = @transform_0, window_bounds = array<i64: 16, 32>}, {transform_indices = @transform_1, window_bounds = array<i64: 32, 16>}, {pipeline_mode = #tpu.pipeline_mode<synchronous>, transform_indices = @transform_2, window_bounds = array<i64: 32, 32>}, {pipeline_mode = #tpu.pipeline_mode<synchronous>, transform_indices = @transform_3, window_bounds = array<i64: 16, 32>}, {pipeline_mode = #tpu.pipeline_mode<synchronous>, transform_indices = @transform_4, window_bounds = array<i64: 16, 32>}, {pipeline_mode = #tpu.pipeline_mode<synchronous>, transform_indices = @transform_5, window_bounds = array<i64: 32, 32>}, {transform_indices = @transform_6, window_bounds = array<i64: 16, 32>}]} {
    %c0 = arith.constant 0 : index
    %c0_0 = arith.constant 0 : index
    %0 = vector.load %arg1[%c0, %c0_0] : memref<16x32xbf16, #tpu.memory_space<vmem>>, vector<16x32xbf16>
    %c0_1 = arith.constant 0 : index
    %c0_2 = arith.constant 0 : index
    %1 = vector.load %arg3[%c0_1, %c0_2] : memref<32x32xbf16, #tpu.memory_space<vmem>>, vector<32x32xbf16>
    %cst = arith.constant dense<0.000000e+00> : vector<16x32xf32>
    %2 = tpu.matmul %0, %1, %cst {dimension_numbers = #tpu.dot_dimension_numbers<[1], [0], [0], [1], [0, 0, 1, 1], [], []>} : vector<16x32xbf16>, vector<32x32xbf16>, vector<16x32xf32> -> vector<16x32xf32>
    %3 = arith.truncf %2 : vector<16x32xf32> to vector<16x32xbf16>
    %c0_3 = arith.constant 0 : index
    %c0_4 = arith.constant 0 : index
    %4 = vector.load %arg2[%c0_3, %c0_4] : memref<32x16xbf16, #tpu.memory_space<vmem>>, vector<32x16xbf16>
    %c0_5 = arith.constant 0 : index
    %c0_6 = arith.constant 0 : index
    %5 = vector.load %arg4[%c0_5, %c0_6] : memref<16x32xbf16, #tpu.memory_space<vmem>>, vector<16x32xbf16>
    %cst_7 = arith.constant dense<0.000000e+00> : vector<32x32xf32>
    %6 = tpu.matmul %4, %5, %cst_7 {dimension_numbers = #tpu.dot_dimension_numbers<[1], [0], [0], [1], [0, 0, 1, 1], [], []>} : vector<32x16xbf16>, vector<16x32xbf16>, vector<32x32xf32> -> vector<32x32xf32>
    %7 = arith.truncf %6 : vector<32x32xf32> to vector<32x32xbf16>
    %c0_8 = arith.constant 0 : index
    %c0_9 = arith.constant 0 : index
    %8 = vector.load %arg2[%c0_8, %c0_9] : memref<32x16xbf16, #tpu.memory_space<vmem>>, vector<32x16xbf16>
    %c0_10 = arith.constant 0 : index
    %c0_11 = arith.constant 0 : index
    %9 = vector.load %arg5[%c0_10, %c0_11] : memref<16x32xbf16, #tpu.memory_space<vmem>>, vector<16x32xbf16>
    %cst_12 = arith.constant dense<0.000000e+00> : vector<32x32xf32>
    %10 = tpu.matmul %8, %9, %cst_12 {dimension_numbers = #tpu.dot_dimension_numbers<[1], [0], [0], [1], [0, 0, 1, 1], [], []>} : vector<32x16xbf16>, vector<16x32xbf16>, vector<32x32xf32> -> vector<32x32xf32>
    %11 = arith.truncf %10 : vector<32x32xf32> to vector<32x32xbf16>
    %c0_13 = arith.constant 0 : index
    %c0_14 = arith.constant 0 : index
    %12 = vector.load %arg6[%c0_13, %c0_14] : memref<32x32xbf16, #tpu.memory_space<vmem>>, vector<32x32xbf16>
    %13 = vector.extract_strided_slice %3 {offsets = [0, 0], sizes = [8, 32], strides = [1, 1]} : vector<16x32xbf16> to vector<8x32xbf16>
    %14 = vector.extract_strided_slice %7 {offsets = [0, 0], sizes = [16, 32], strides = [1, 1]} : vector<32x32xbf16> to vector<16x32xbf16>
    %15 = vector.extract_strided_slice %11 {offsets = [0, 0], sizes = [16, 32], strides = [1, 1]} : vector<32x32xbf16> to vector<16x32xbf16>
    %cst_15 = arith.constant 0.000000e+00 : f32
    %16 = vector.broadcast %cst_15 : f32 to vector<8x32xf32>
    %17 = vector.extract_strided_slice %13 {offsets = [0, 0], sizes = [8, 16], strides = [1, 1]} : vector<8x32xbf16> to vector<8x16xbf16>
    %18 = vector.extract_strided_slice %14 {offsets = [0, 0], sizes = [16, 16], strides = [1, 1]} : vector<16x32xbf16> to vector<16x16xbf16>
    %19 = vector.extract_strided_slice %15 {offsets = [0, 0], sizes = [16, 16], strides = [1, 1]} : vector<16x32xbf16> to vector<16x16xbf16>
    %cst_16 = arith.constant dense<0.000000e+00> : vector<8x16xf32>
    %20 = tpu.matmul %17, %18, %cst_16 {dimension_numbers = #tpu.dot_dimension_numbers<[1], [1], [0], [0], [0, 0, 1, 0], [], []>} : vector<8x16xbf16>, vector<16x16xbf16>, vector<8x16xf32> -> vector<8x16xf32>
    %cst_17 = arith.constant dense<0xFF800000> : vector<8xf32>
    %21 = vector.multi_reduction <maximumf>, %20, %cst_17 [1] : vector<8x16xf32> to vector<8xf32>
    %22 = vector.shape_cast %21 : vector<8xf32> to vector<8x1xf32>
    %23 = vector.broadcast %22 : vector<8x1xf32> to vector<8x16xf32>
    %24 = arith.subf %20, %23 : vector<8x16xf32>
    %25 = math.exp %24 : vector<8x16xf32>
    %cst_18 = arith.constant dense<0.000000e+00> : vector<8xf32>
    %26 = vector.multi_reduction <add>, %25, %cst_18 [1] : vector<8x16xf32> to vector<8xf32>
    %27 = vector.shape_cast %26 : vector<8xf32> to vector<8x1xf32>
    %28 = tpu.reciprocal %27 {approx = true} : vector<8x1xf32> -> vector<8x1xf32>
    %29 = vector.broadcast %28 : vector<8x1xf32> to vector<8x16xf32>
    %30 = arith.mulf %25, %29 : vector<8x16xf32>
    %31 = arith.truncf %30 : vector<8x16xf32> to vector<8x16xbf16>
    %cst_19 = arith.constant dense<0.000000e+00> : vector<8x16xf32>
    %32 = tpu.matmul %31, %19, %cst_19 {dimension_numbers = #tpu.dot_dimension_numbers<[1], [0], [0], [1], [0, 0, 1, 1], [], []>} : vector<8x16xbf16>, vector<16x16xbf16>, vector<8x16xf32> -> vector<8x16xf32>
    %33 = arith.truncf %32 : vector<8x16xf32> to vector<8x16xbf16>
    %34 = vector.extract_strided_slice %12 {offsets = [0, 0], sizes = [16, 32], strides = [1, 1]} : vector<32x32xbf16> to vector<16x32xbf16>
    %cst_20 = arith.constant dense<0.000000e+00> : vector<8x32xf32>
    %35 = tpu.matmul %33, %34, %cst_20 {dimension_numbers = #tpu.dot_dimension_numbers<[1], [0], [0], [1], [0, 0, 1, 1], [], []>} : vector<8x16xbf16>, vector<16x32xbf16>, vector<8x32xf32> -> vector<8x32xf32>
    %36 = arith.addf %16, %35 : vector<8x32xf32>
    %37 = vector.extract_strided_slice %13 {offsets = [0, 16], sizes = [8, 16], strides = [1, 1]} : vector<8x32xbf16> to vector<8x16xbf16>
    %38 = vector.extract_strided_slice %14 {offsets = [0, 16], sizes = [16, 16], strides = [1, 1]} : vector<16x32xbf16> to vector<16x16xbf16>
    %39 = vector.extract_strided_slice %15 {offsets = [0, 16], sizes = [16, 16], strides = [1, 1]} : vector<16x32xbf16> to vector<16x16xbf16>
    %cst_21 = arith.constant dense<0.000000e+00> : vector<8x16xf32>
    %40 = tpu.matmul %37, %38, %cst_21 {dimension_numbers = #tpu.dot_dimension_numbers<[1], [1], [0], [0], [0, 0, 1, 0], [], []>} : vector<8x16xbf16>, vector<16x16xbf16>, vector<8x16xf32> -> vector<8x16xf32>
    %cst_22 = arith.constant dense<0xFF800000> : vector<8xf32>
    %41 = vector.multi_reduction <maximumf>, %40, %cst_22 [1] : vector<8x16xf32> to vector<8xf32>
    %42 = vector.shape_cast %41 : vector<8xf32> to vector<8x1xf32>
    %43 = vector.broadcast %42 : vector<8x1xf32> to vector<8x16xf32>
    %44 = arith.subf %40, %43 : vector<8x16xf32>
    %45 = math.exp %44 : vector<8x16xf32>
    %cst_23 = arith.constant dense<0.000000e+00> : vector<8xf32>
    %46 = vector.multi_reduction <add>, %45, %cst_23 [1] : vector<8x16xf32> to vector<8xf32>
    %47 = vector.shape_cast %46 : vector<8xf32> to vector<8x1xf32>
    %48 = tpu.reciprocal %47 {approx = true} : vector<8x1xf32> -> vector<8x1xf32>
    %49 = vector.broadcast %48 : vector<8x1xf32> to vector<8x16xf32>
    %50 = arith.mulf %45, %49 : vector<8x16xf32>
    %51 = arith.truncf %50 : vector<8x16xf32> to vector<8x16xbf16>
    %cst_24 = arith.constant dense<0.000000e+00> : vector<8x16xf32>
    %52 = tpu.matmul %51, %39, %cst_24 {dimension_numbers = #tpu.dot_dimension_numbers<[1], [0], [0], [1], [0, 0, 1, 1], [], []>} : vector<8x16xbf16>, vector<16x16xbf16>, vector<8x16xf32> -> vector<8x16xf32>
    %53 = arith.truncf %52 : vector<8x16xf32> to vector<8x16xbf16>
    %54 = vector.extract_strided_slice %12 {offsets = [16, 0], sizes = [16, 32], strides = [1, 1]} : vector<32x32xbf16> to vector<16x32xbf16>
    %cst_25 = arith.constant dense<0.000000e+00> : vector<8x32xf32>
    %55 = tpu.matmul %53, %54, %cst_25 {dimension_numbers = #tpu.dot_dimension_numbers<[1], [0], [0], [1], [0, 0, 1, 1], [], []>} : vector<8x16xbf16>, vector<16x32xbf16>, vector<8x32xf32> -> vector<8x32xf32>
    %56 = arith.addf %36, %55 : vector<8x32xf32>
    %c0_26 = arith.constant 0 : index
    %c0_27 = arith.constant 0 : index
    %57 = vector.load %arg7[%c0_26, %c0_27] : memref<16x32xf32, #tpu.memory_space<vmem>>, vector<8x32xf32>
    tpu.vector_store %arg7[%c0_26, %c0_27], %56 {strides = array<i32>} : memref<16x32xf32, #tpu.memory_space<vmem>>, vector<8x32xf32>,
    %58 = vector.extract_strided_slice %3 {offsets = [8, 0], sizes = [8, 32], strides = [1, 1]} : vector<16x32xbf16> to vector<8x32xbf16>
    %59 = vector.extract_strided_slice %7 {offsets = [16, 0], sizes = [16, 32], strides = [1, 1]} : vector<32x32xbf16> to vector<16x32xbf16>
    %60 = vector.extract_strided_slice %11 {offsets = [16, 0], sizes = [16, 32], strides = [1, 1]} : vector<32x32xbf16> to vector<16x32xbf16>
    %cst_28 = arith.constant 0.000000e+00 : f32
    %61 = vector.broadcast %cst_28 : f32 to vector<8x32xf32>
    %62 = vector.extract_strided_slice %58 {offsets = [0, 0], sizes = [8, 16], strides = [1, 1]} : vector<8x32xbf16> to vector<8x16xbf16>
    %63 = vector.extract_strided_slice %59 {offsets = [0, 0], sizes = [16, 16], strides = [1, 1]} : vector<16x32xbf16> to vector<16x16xbf16>
    %64 = vector.extract_strided_slice %60 {offsets = [0, 0], sizes = [16, 16], strides = [1, 1]} : vector<16x32xbf16> to vector<16x16xbf16>
    %cst_29 = arith.constant dense<0.000000e+00> : vector<8x16xf32>
    %65 = tpu.matmul %62, %63, %cst_29 {dimension_numbers = #tpu.dot_dimension_numbers<[1], [1], [0], [0], [0, 0, 1, 0], [], []>} : vector<8x16xbf16>, vector<16x16xbf16>, vector<8x16xf32> -> vector<8x16xf32>
    %cst_30 = arith.constant dense<0xFF800000> : vector<8xf32>
    %66 = vector.multi_reduction <maximumf>, %65, %cst_30 [1] : vector<8x16xf32> to vector<8xf32>
    %67 = vector.shape_cast %66 : vector<8xf32> to vector<8x1xf32>
    %68 = vector.broadcast %67 : vector<8x1xf32> to vector<8x16xf32>
    %69 = arith.subf %65, %68 : vector<8x16xf32>
    %70 = math.exp %69 : vector<8x16xf32>
    %cst_31 = arith.constant dense<0.000000e+00> : vector<8xf32>
    %71 = vector.multi_reduction <add>, %70, %cst_31 [1] : vector<8x16xf32> to vector<8xf32>
    %72 = vector.shape_cast %71 : vector<8xf32> to vector<8x1xf32>
    %73 = tpu.reciprocal %72 {approx = true} : vector<8x1xf32> -> vector<8x1xf32>
    %74 = vector.broadcast %73 : vector<8x1xf32> to vector<8x16xf32>
    %75 = arith.mulf %70, %74 : vector<8x16xf32>
    %76 = arith.truncf %75 : vector<8x16xf32> to vector<8x16xbf16>
    %cst_32 = arith.constant dense<0.000000e+00> : vector<8x16xf32>
    %77 = tpu.matmul %76, %64, %cst_32 {dimension_numbers = #tpu.dot_dimension_numbers<[1], [0], [0], [1], [0, 0, 1, 1], [], []>} : vector<8x16xbf16>, vector<16x16xbf16>, vector<8x16xf32> -> vector<8x16xf32>
    %78 = arith.truncf %77 : vector<8x16xf32> to vector<8x16xbf16>
    %79 = vector.extract_strided_slice %12 {offsets = [0, 0], sizes = [16, 32], strides = [1, 1]} : vector<32x32xbf16> to vector<16x32xbf16>
    %cst_33 = arith.constant dense<0.000000e+00> : vector<8x32xf32>
    %80 = tpu.matmul %78, %79, %cst_33 {dimension_numbers = #tpu.dot_dimension_numbers<[1], [0], [0], [1], [0, 0, 1, 1], [], []>} : vector<8x16xbf16>, vector<16x32xbf16>, vector<8x32xf32> -> vector<8x32xf32>
    %81 = arith.addf %61, %80 : vector<8x32xf32>
    %82 = vector.extract_strided_slice %58 {offsets = [0, 16], sizes = [8, 16], strides = [1, 1]} : vector<8x32xbf16> to vector<8x16xbf16>
    %83 = vector.extract_strided_slice %59 {offsets = [0, 16], sizes = [16, 16], strides = [1, 1]} : vector<16x32xbf16> to vector<16x16xbf16>
    %84 = vector.extract_strided_slice %60 {offsets = [0, 16], sizes = [16, 16], strides = [1, 1]} : vector<16x32xbf16> to vector<16x16xbf16>
    %cst_34 = arith.constant dense<0.000000e+00> : vector<8x16xf32>
    %85 = tpu.matmul %82, %83, %cst_34 {dimension_numbers = #tpu.dot_dimension_numbers<[1], [1], [0], [0], [0, 0, 1, 0], [], []>} : vector<8x16xbf16>, vector<16x16xbf16>, vector<8x16xf32> -> vector<8x16xf32>
    %cst_35 = arith.constant dense<0xFF800000> : vector<8xf32>
    %86 = vector.multi_reduction <maximumf>, %85, %cst_35 [1] : vector<8x16xf32> to vector<8xf32>
    %87 = vector.shape_cast %86 : vector<8xf32> to vector<8x1xf32>
    %88 = vector.broadcast %87 : vector<8x1xf32> to vector<8x16xf32>
    %89 = arith.subf %85, %88 : vector<8x16xf32>
    %90 = math.exp %89 : vector<8x16xf32>
    %cst_36 = arith.constant dense<0.000000e+00> : vector<8xf32>
    %91 = vector.multi_reduction <add>, %90, %cst_36 [1] : vector<8x16xf32> to vector<8xf32>
    %92 = vector.shape_cast %91 : vector<8xf32> to vector<8x1xf32>
    %93 = tpu.reciprocal %92 {approx = true} : vector<8x1xf32> -> vector<8x1xf32>
    %94 = vector.broadcast %93 : vector<8x1xf32> to vector<8x16xf32>
    %95 = arith.mulf %90, %94 : vector<8x16xf32>
    %96 = arith.truncf %95 : vector<8x16xf32> to vector<8x16xbf16>
    %cst_37 = arith.constant dense<0.000000e+00> : vector<8x16xf32>
    %97 = tpu.matmul %96, %84, %cst_37 {dimension_numbers = #tpu.dot_dimension_numbers<[1], [0], [0], [1], [0, 0, 1, 1], [], []>} : vector<8x16xbf16>, vector<16x16xbf16>, vector<8x16xf32> -> vector<8x16xf32>
    %98 = arith.truncf %97 : vector<8x16xf32> to vector<8x16xbf16>
    %99 = vector.extract_strided_slice %12 {offsets = [16, 0], sizes = [16, 32], strides = [1, 1]} : vector<32x32xbf16> to vector<16x32xbf16>
    %cst_38 = arith.constant dense<0.000000e+00> : vector<8x32xf32>
    %100 = tpu.matmul %98, %99, %cst_38 {dimension_numbers = #tpu.dot_dimension_numbers<[1], [0], [0], [1], [0, 0, 1, 1], [], []>} : vector<8x16xbf16>, vector<16x32xbf16>, vector<8x32xf32> -> vector<8x32xf32>
    %101 = arith.addf %81, %100 : vector<8x32xf32>
    %c8 = arith.constant 8 : index
    %c0_39 = arith.constant 0 : index
    %102 = vector.load %arg7[%c8, %c0_39] : memref<16x32xf32, #tpu.memory_space<vmem>>, vector<8x32xf32>
    tpu.vector_store %arg7[%c8, %c0_39], %101 {strides = array<i32>} : memref<16x32xf32, #tpu.memory_space<vmem>>, vector<8x32xf32>,
    return
  }
  func.func @transform_0(%arg0: i32) -> (i32, i32) {
    %c0_i32 = arith.constant 0 : i32
    %c0_i32_0 = arith.constant 0 : i32
    return %arg0, %c0_i32 : i32, i32
  }
  func.func @transform_1(%arg0: i32) -> (i32, i32) {
    %c0_i32 = arith.constant 0 : i32
    %c0_i32_0 = arith.constant 0 : i32
    return %arg0, %c0_i32 : i32, i32
  }
  func.func @transform_2(%arg0: i32) -> (i32, i32) {
    %c0_i32 = arith.constant 0 : i32
    %c0_i32_0 = arith.constant 0 : i32
    %c0_i32_1 = arith.constant 0 : i32
    return %c0_i32, %c0_i32_0 : i32, i32
  }
  func.func @transform_3(%arg0: i32) -> (i32, i32) {
    %c0_i32 = arith.constant 0 : i32
    %c0_i32_0 = arith.constant 0 : i32
    %c0_i32_1 = arith.constant 0 : i32
    return %c0_i32, %c0_i32_0 : i32, i32
  }
  func.func @transform_4(%arg0: i32) -> (i32, i32) {
    %c0_i32 = arith.constant 0 : i32
    %c0_i32_0 = arith.constant 0 : i32
    %c0_i32_1 = arith.constant 0 : i32
    return %c0_i32, %c0_i32_0 : i32, i32
  }
  func.func @transform_5(%arg0: i32) -> (i32, i32) {
    %c0_i32 = arith.constant 0 : i32
    %c0_i32_0 = arith.constant 0 : i32
    %c0_i32_1 = arith.constant 0 : i32
    return %c0_i32, %c0_i32_0 : i32, i32
  }
  func.func @transform_6(%arg0: i32) -> (i32, i32) {
    %c0_i32 = arith.constant 0 : i32
    %c0_i32_0 = arith.constant 0 : i32
    return %arg0, %c0_i32 : i32, i32
  }
}

</mosaic_0001>

<llo_original>
// kernel: tpu_custom_call.1
$region0: #{tpu_custom_call.1}
  #allocation0 [shape = 'u32[]', space=smem, size = 0x4, offset = 0x4, fixed_abs, tag = 'smem constant byte address 0x4 - core index']
  #allocation1 [shape = 'u32[144,128]{1,0:T(1,128)}', space=vmem, size = 0x12000, scoped, tag = 'internal scratch']
  %s0 = inlined_call_operand.hbm [shape: bf16[16,32], index: 0, kind: input, shape index: {}]
  %s1 = inlined_call_operand.vmem [shape: bf16[32,16], index: 1, kind: input, shape index: {}]
  %s2 = inlined_call_operand.vmem [shape: bf16[32,32], index: 2, kind: input, shape index: {}]
  %s3 = inlined_call_operand.hbm [shape: bf16[16,32], index: 3, kind: input, shape index: {}]
  %s4 = inlined_call_operand.hbm [shape: bf16[16,32], index: 4, kind: input, shape index: {}]
  %s5 = inlined_call_operand.vmem [shape: bf16[32,32], index: 5, kind: input, shape index: {}]
  %s6 = inlined_call_operand.hbm [shape: f32[16,32], index: 6, kind: output, shape index: {}]
  %s7 = sld [smem:[#allocation0]]
  $region46: #{tpu_custom_call.1} parent=0
    _
  %s9 = ssub.s32 1, %s7
  %s10 = scalar_select 0, %s9, %s7
  $region1: #{tpu_custom_call.1} parent=0
    #allocation2 [shape = 'u8[4096]{0}', space=vmem, size = 0x1000, scoped, tag = 'input window, operand 0, single buffered']
    #allocation3 [shape = 's32[1]{0}', space=sflag, size = 0x4, scoped, tag = 'scoped memory for tpu_custom_call.1']
    #allocation4 [shape = 's32[1]{0}', space=sflag, size = 0x4, scoped, tag = 'scoped memory for tpu_custom_call.1']
    #allocation5 [shape = 'u8[4096]{0}', space=vmem, size = 0x1000, scoped, tag = 'input window, operand 3, single buffered']
    #allocation6 [shape = 's32[1]{0}', space=sflag, size = 0x4, scoped, tag = 'scoped memory for tpu_custom_call.1']
    #allocation7 [shape = 'u8[4096]{0}', space=vmem, size = 0x1000, scoped, tag = 'input window, operand 4, single buffered']
    #allocation8 [shape = 'u8[8192]{0}', space=vmem, size = 0x2000, scoped, tag = 'output window, operand 0, single buffered']
    %11 = vsyncpa [#allocation3], 0
    %12 = vsyncpa [#allocation6], 0
    %13 = vsyncpa [#allocation4], 0
    // Predicated region
    $region2: #{tpu_custom_call.1} parent=1 // pred_check
      _
    $region3: #{tpu_custom_call.1} parent=1 // pred_check_branch
      %15 = sbr.rel (0) target = $region5
    $region4: #{tpu_custom_call.1} parent=1 // pred_region
      %s17 = ssub.s32 128, 128
      %18 = vsyncadd [#allocation3], %s17
      %s19 = sshll.u32 [#allocation2], 4
      %s20 = int_to_ptr.vmem [resolvable:$true] %s19
      %25 = dma.hbm_to_vmem [thread:$0]  %s0, 128, %s20, [#allocation3], 64, 64, 4
    $region5: #{tpu_custom_call.1} parent=1 // pred_fallthru
      _
    // Predicated region
    $region6: #{tpu_custom_call.1} parent=1 // pred_check
      _
    $region7: #{tpu_custom_call.1} parent=1 // pred_check_branch
      %27 = sbr.rel (0) target = $region9
    $region8: #{tpu_custom_call.1} parent=1 // pred_region
      _
    $region9: #{tpu_custom_call.1} parent=1 // pred_fallthru
      _
    // Predicated region
    $region10: #{tpu_custom_call.1} parent=1 // pred_check
      _
    $region11: #{tpu_custom_call.1} parent=1 // pred_check_branch
      %29 = sbr.rel (0) target = $region13
    $region12: #{tpu_custom_call.1} parent=1 // pred_region
      _
    $region13: #{tpu_custom_call.1} parent=1 // pred_fallthru
      _
    // Predicated region
    $region14: #{tpu_custom_call.1} parent=1 // pred_check
      _
    $region15: #{tpu_custom_call.1} parent=1 // pred_check_branch
      %31 = sbr.rel (0) target = $region17
    $region16: #{tpu_custom_call.1} parent=1 // pred_region
      %s33 = ssub.s32 128, 128
      %34 = vsyncadd [#allocation6], %s33
      %s35 = sshll.u32 [#allocation5], 4
      %s36 = int_to_ptr.vmem [resolvable:$true] %s35
      %41 = dma.hbm_to_vmem [thread:$0]  %s3, 128, %s36, [#allocation6], 64, 64, 4
    $region17: #{tpu_custom_call.1} parent=1 // pred_fallthru
      _
    // Predicated region
    $region18: #{tpu_custom_call.1} parent=1 // pred_check
      _
    $region19: #{tpu_custom_call.1} parent=1 // pred_check_branch
      %43 = sbr.rel (0) target = $region21
    $region20: #{tpu_custom_call.1} parent=1 // pred_region
      %s45 = ssub.s32 128, 128
      %46 = vsyncadd [#allocation6], %s45
      %s47 = sshll.u32 [#allocation7], 4
      %s48 = int_to_ptr.vmem [resolvable:$true] %s47
      %53 = dma.hbm_to_vmem [thread:$0]  %s4, 128, %s48, [#allocation6], 64, 64, 4
    $region21: #{tpu_custom_call.1} parent=1 // pred_fallthru
      _
    // Predicated region
    $region22: #{tpu_custom_call.1} parent=1 // pred_check
      _
    $region23: #{tpu_custom_call.1} parent=1 // pred_check_branch
      %55 = sbr.rel (0) target = $region25
    $region24: #{tpu_custom_call.1} parent=1 // pred_region
      _
    $region25: #{tpu_custom_call.1} parent=1 // pred_fallthru
      _
    // Predicated region
    $region26: #{tpu_custom_call.1} parent=1 // pred_check
      _
    $region27: #{tpu_custom_call.1} parent=1 // pred_check_branch
      %57 = sbr.rel (0) target = $region29
    $region28: #{tpu_custom_call.1} parent=1 // pred_region
      %58 = dma.done [#allocation3], 128
    $region29: #{tpu_custom_call.1} parent=1 // pred_fallthru
      _
    // Predicated region
    $region30: #{tpu_custom_call.1} parent=1 // pred_check
      _
    $region31: #{tpu_custom_call.1} parent=1 // pred_check_branch
      %60 = sbr.rel (0) target = $region33
    $region32: #{tpu_custom_call.1} parent=1 // pred_region
      %61 = dma.done [#allocation6], 128
    $region33: #{tpu_custom_call.1} parent=1 // pred_fallthru
      _
    // Predicated region
    $region34: #{tpu_custom_call.1} parent=1 // pred_check
      _
    $region35: #{tpu_custom_call.1} parent=1 // pred_check_branch
      %63 = sbr.rel (0) target = $region37
    $region36: #{tpu_custom_call.1} parent=1 // pred_region
      %64 = dma.done [#allocation6], 128
    $region37: #{tpu_custom_call.1} parent=1 // pred_fallthru
      _
    %v66 = vld [vmem:[#allocation2] sm:$0xf]
    %v67 = vld [vmem:[#allocation2 + $0x4] sm:$0xf]
    %v68 = vld [vmem:[%s2] sm:$0xf]
    %v69 = vld [vmem:[%s2 + $0x4] sm:$0xf]
    %v70 = vld [vmem:[%s2 + $0x8] sm:$0xf]
    %v71 = vld [vmem:[%s2 + $0xc] sm:$0xf]
    %v74 = vunpack.c.l.b16 %v66
    %v75 = vunpack.c.l.b16 %v67
    %v76 = vpack.c.b16 %v75, %v74
    %v81 = vunpack.c.l.b16 %v68
    %v82 = vunpack.c.l.b16 %v69
    %v83 = vunpack.c.l.b16 %v70
    %v84 = vunpack.c.l.b16 %v71
    %v85 = vpack.c.b16 %v82, %v81
    %v86 = vpack.c.b16 %v84, %v83
    %vm89 = vcmask 261120
    %v91 = vsel %vm89, %v76, 0
    %93 = vmatprep.subr.bf16.mxu0 0
    %94 = vmatpush1.bf16.msra.mxu0 0
    %95 = vmatprep.subr.bf16.mxu0 0
    %96 = vmatpush1.bf16.msra.mxu0 0
    %97 = vmatprep.subr.bf16.mxu0 0
    %98 = vmatpush1.bf16.msra.mxu0 0
    %99 = vmatprep.subr.bf16.mxu0 0
    %100 = vmatpush1.bf16.msra.mxu0 0
    %101 = vmatprep.subr.bf16.mxu0 0
    %102 = vmatpush1.bf16.msra.mxu0 0
    %103 = vmatprep.subr.bf16.mxu0 0
    %104 = vmatpush1.bf16.msra.mxu0 0
    %105 = vmatprep.subr.bf16.mxu0 0
    %106 = vmatpush1.bf16.msra.mxu0 %v86
    %107 = vmatprep.subr.bf16.mxu0 0
    %108 = vmatpush1.bf16.msra.mxu0 %v85
    %109 = vmatprep.subr.bf16.mxu0 0
    %110 = vmatpush2.bf16.msra.mxu0 0
    %111 = vmatprep.subr.bf16.mxu0 0
    %112 = vmatpush2.bf16.msra.mxu0 0
    %113 = vmatprep.subr.bf16.mxu0 0
    %114 = vmatpush2.bf16.msra.mxu0 0
    %115 = vmatprep.subr.bf16.mxu0 0
    %116 = vmatpush2.bf16.msra.mxu0 0
    %117 = vmatprep.subr.bf16.mxu0 0
    %118 = vmatpush2.bf16.msra.mxu0 0
    %119 = vmatprep.subr.bf16.mxu0 0
    %120 = vmatpush2.bf16.msra.mxu0 0
    %121 = vmatprep.subr.bf16.mxu0 0
    %122 = vmatpush2.bf16.msra.mxu0 0
    %123 = vmatprep.subr.bf16.mxu0 0
    %124 = vmatpush2.bf16.msra.mxu0 0
    %125 = vmatprep.mubr.bf16.mxu0 0
    %126 = vmatmul.mubr.bf16.gmra.mxu0 %v91
    %v127 = vpop.f32.mrf.mxu0
    %v128 = vadd.f32 0.0, %v127
    %v129 = vpop.f32.mrf.mxu0
    %v130 = vpop.f32.mrf.mxu0
    %v131 = vadd.f32 0.0, %v130
    %v132 = vpop.f32.mrf.mxu0
    %133 = vdwg.mxu0
    %v134 = vpack.c.bf16 %v131, %v128
    %v135 = vld [vmem:[%s1] sm:$0xf]
    %v136 = vld [vmem:[%s1 + $0x4] sm:$0xf]
    %v137 = vld [vmem:[%s1 + $0x8] sm:$0xf]
    %v138 = vld [vmem:[%s1 + $0xc] sm:$0xf]
    %v139 = vld [vmem:[#allocation5] sm:$0xf]
    %v140 = vld [vmem:[#allocation5 + $0x4] sm:$0xf]
    %v145 = vunpack.c.l.b16 %v135
    %v146 = vunpack.c.l.b16 %v136
    %v147 = vunpack.c.l.b16 %v137
    %v148 = vunpack.c.l.b16 %v138
    %v149 = vpack.c.b16 %v146, %v145
    %v150 = vpack.c.b16 %v148, %v147
    %v153 = vunpack.c.l.b16 %v139
    %v154 = vunpack.c.l.b16 %v140
    %v155 = vpack.c.b16 %v154, %v153
    %vm157 = vcmask 130048
    %v159 = vsel %vm157, %v149, 0
    %v162 = vsel %vm157, %v150, 0
    %164 = vmatprep.subr.bf16.mxu0 0
    %165 = vmatpush1.bf16.msra.mxu0 0
    %166 = vmatprep.subr.bf16.mxu0 0
    %167 = vmatpush1.bf16.msra.mxu0 0
    %168 = vmatprep.subr.bf16.mxu0 0
    %169 = vmatpush1.bf16.msra.mxu0 0
    %170 = vmatprep.subr.bf16.mxu0 0
    %171 = vmatpush1.bf16.msra.mxu0 0
    %172 = vmatprep.subr.bf16.mxu0 0
    %173 = vmatpush1.bf16.msra.mxu0 0
    %174 = vmatprep.subr.bf16.mxu0 0
    %175 = vmatpush1.bf16.msra.mxu0 0
    %176 = vmatprep.subr.bf16.mxu0 0
    %177 = vmatpush1.bf16.msra.mxu0 0
    %178 = vmatprep.subr.bf16.mxu0 0
    %179 = vmatpush1.bf16.msra.mxu0 %v155
    %180 = vmatprep.subr.bf16.mxu0 0
    %181 = vmatpush2.bf16.msra.mxu0 0
    %182 = vmatprep.subr.bf16.mxu0 0
    %183 = vmatpush2.bf16.msra.mxu0 0
    %184 = vmatprep.subr.bf16.mxu0 0
    %185 = vmatpush2.bf16.msra.mxu0 0
    %186 = vmatprep.subr.bf16.mxu0 0
    %187 = vmatpush2.bf16.msra.mxu0 0
    %188 = vmatprep.subr.bf16.mxu0 0
    %189 = vmatpush2.bf16.msra.mxu0 0
    %190 = vmatprep.subr.bf16.mxu0 0
    %191 = vmatpush2.bf16.msra.mxu0 0
    %192 = vmatprep.subr.bf16.mxu0 0
    %193 = vmatpush2.bf16.msra.mxu0 0
    %194 = vmatprep.subr.bf16.mxu0 0
    %195 = vmatpush2.bf16.msra.mxu0 0
    %196 = vmatprep.mubr.bf16.mxu0 0
    %197 = vmatmul.mubr.bf16.gmra.mxu0 %v159
    %v198 = vpop.f32.mrf.mxu0
    %v199 = vadd.f32 0.0, %v198
    %v200 = vpop.f32.mrf.mxu0
    %v201 = vpop.f32.mrf.mxu0
    %v202 = vadd.f32 0.0, %v201
    %v203 = vpop.f32.mrf.mxu0
    %204 = vmatprep.mubr.bf16.mxu0 0
    %205 = vmatmul.mubr.bf16.gmra.mxu0 %v162
    %v206 = vpop.f32.mrf.mxu0
    %v207 = vadd.f32 0.0, %v206
    %v208 = vpop.f32.mrf.mxu0
    %v209 = vpop.f32.mrf.mxu0
    %v210 = vadd.f32 0.0, %v209
    %v211 = vpop.f32.mrf.mxu0
    %212 = vdwg.mxu0
    %v213 = vpack.c.bf16 %v202, %v199
    %v214 = vpack.c.bf16 %v210, %v207
    %v215 = vld [vmem:[#allocation7] sm:$0xf]
    %v216 = vld [vmem:[#allocation7 + $0x4] sm:$0xf]
    %v219 = vunpack.c.l.b16 %v215
    %v220 = vunpack.c.l.b16 %v216
    %v221 = vpack.c.b16 %v220, %v219
    %223 = vmatprep.subr.bf16.mxu0 0
    %224 = vmatpush1.bf16.msra.mxu0 0
    %225 = vmatprep.subr.bf16.mxu0 0
    %226 = vmatpush1.bf16.msra.mxu0 0
    %227 = vmatprep.subr.bf16.mxu0 0
    %228 = vmatpush1.bf16.msra.mxu0 0
    %229 = vmatprep.subr.bf16.mxu0 0
    %230 = vmatpush1.bf16.msra.mxu0 0
    %231 = vmatprep.subr.bf16.mxu0 0
    %232 = vmatpush1.bf16.msra.mxu0 0
    %233 = vmatprep.subr.bf16.mxu0 0
    %234 = vmatpush1.bf16.msra.mxu0 0
    %235 = vmatprep.subr.bf16.mxu0 0
    %236 = vmatpush1.bf16.msra.mxu0 0
    %237 = vmatprep.subr.bf16.mxu0 0
    %238 = vmatpush1.bf16.msra.mxu0 %v221
    %239 = vmatprep.subr.bf16.mxu0 0
    %240 = vmatpush2.bf16.msra.mxu0 0
    %241 = vmatprep.subr.bf16.mxu0 0
    %242 = vmatpush2.bf16.msra.mxu0 0
    %243 = vmatprep.subr.bf16.mxu0 0
    %244 = vmatpush2.bf16.msra.mxu0 0
    %245 = vmatprep.subr.bf16.mxu0 0
    %246 = vmatpush2.bf16.msra.mxu0 0
    %247 = vmatprep.subr.bf16.mxu0 0
    %248 = vmatpush2.bf16.msra.mxu0 0
    %249 = vmatprep.subr.bf16.mxu0 0
    %250 = vmatpush2.bf16.msra.mxu0 0
    %251 = vmatprep.subr.bf16.mxu0 0
    %252 = vmatpush2.bf16.msra.mxu0 0
    %253 = vmatprep.subr.bf16.mxu0 0
    %254 = vmatpush2.bf16.msra.mxu0 0
    %255 = vmatprep.mubr.bf16.mxu0 0
    %256 = vmatmul.mubr.bf16.gmra.mxu0 %v159
    %v257 = vpop.f32.mrf.mxu0
    %v258 = vadd.f32 0.0, %v257
    %v259 = vpop.f32.mrf.mxu0
    %v260 = vpop.f32.mrf.mxu0
    %v261 = vadd.f32 0.0, %v260
    %v262 = vpop.f32.mrf.mxu0
    %263 = vmatprep.mubr.bf16.mxu0 0
    %264 = vmatmul.mubr.bf16.gmra.mxu0 %v162
    %v265 = vpop.f32.mrf.mxu0
    %v266 = vadd.f32 0.0, %v265
    %v267 = vpop.f32.mrf.mxu0
    %v268 = vpop.f32.mrf.mxu0
    %v269 = vadd.f32 0.0, %v268
    %v270 = vpop.f32.mrf.mxu0
    %271 = vdwg.mxu0
    %v272 = vpack.c.bf16 %v261, %v258
    %v273 = vpack.c.bf16 %v269, %v266
    %v274 = vld [vmem:[%s5] sm:$0xf]
    %v275 = vld [vmem:[%s5 + $0x4] sm:$0xf]
    %v276 = vld [vmem:[%s5 + $0x8] sm:$0xf]
    %v277 = vld [vmem:[%s5 + $0xc] sm:$0xf]
    %v279 = vsel %vm157, %v134, 0
    %v282 = vsel %vm157, %v213, 0
    %284 = vmatprep.subr.bf16.mxu0 0
    %285 = vmatpush1.bf16.xpose.msra.mxu0 0
    %286 = vmatprep.subr.bf16.mxu0 0
    %287 = vmatpush1.bf16.xpose.msra.mxu0 0
    %288 = vmatprep.subr.bf16.mxu0 0
    %289 = vmatpush1.bf16.xpose.msra.mxu0 0
    %290 = vmatprep.subr.bf16.mxu0 0
    %291 = vmatpush1.bf16.xpose.msra.mxu0 0
    %292 = vmatprep.subr.bf16.mxu0 0
    %293 = vmatpush1.bf16.xpose.msra.mxu0 0
    %294 = vmatprep.subr.bf16.mxu0 0
    %295 = vmatpush1.bf16.xpose.msra.mxu0 0
    %296 = vmatprep.subr.bf16.mxu0 0
    %297 = vmatpush1.bf16.xpose.msra.mxu0 0
    %298 = vmatprep.subr.bf16.mxu0 0
    %299 = vmatpush1.bf16.xpose.msra.mxu0 %v282
    %300 = vmatprep.subr.bf16.mxu0 0
    %301 = vmatpush2.bf16.xpose.msra.mxu0 0
    %302 = vmatprep.subr.bf16.mxu0 0
    %303 = vmatpush2.bf16.xpose.msra.mxu0 0
    %304 = vmatprep.subr.bf16.mxu0 0
    %305 = vmatpush2.bf16.xpose.msra.mxu0 0
    %306 = vmatprep.subr.bf16.mxu0 0
    %307 = vmatpush2.bf16.xpose.msra.mxu0 0
    %308 = vmatprep.subr.bf16.mxu0 0
    %309 = vmatpush2.bf16.xpose.msra.mxu0 0
    %310 = vmatprep.subr.bf16.mxu0 0
    %311 = vmatpush2.bf16.xpose.msra.mxu0 0
    %312 = vmatprep.subr.bf16.mxu0 0
    %313 = vmatpush2.bf16.xpose.msra.mxu0 0
    %314 = vmatprep.subr.bf16.mxu0 0
    %315 = vmatpush2.bf16.xpose.msra.mxu0 0
    %316 = vmatprep.mubr.bf16.mxu0 0
    %317 = vmatmul.mubr.bf16.gmra.mxu0 %v279
    %v318 = vpop.f32.mrf.mxu0
    %v319 = vadd.f32 0.0, %v318
    %v320 = vpop.f32.mrf.mxu0
    %v321 = vpop.f32.mrf.mxu0
    %v322 = vpop.f32.mrf.mxu0
    %323 = vdwg.mxu0
    %v324 = vsel %vm157, %v319, -inf
    %325 = vmax.xlane.f32.xlu0 %v324
    %v326 = vpop.xlane.xlu0 %325
    %v327 = vsub.f32 %v319, %v326
    %v328 = vmul.f32 %v327, 1.442695
    %v329 = vpow.pop %v328
    %v330 = vsel %vm157, %v329, 0.0
    %331 = vadd.xlane.f32.xlu0 %v330
    %v332 = vpop.xlane.xlu0 %331
    %v333 = vrcp.pop %v332
    %v334 = vmul.f32 %v329, %v333
    %v335 = vpack.c.bf16 %v334, %v334
    %v337 = vsel %vm157, %v335, 0
    %339 = vmatprep.subr.bf16.mxu0 0
    %340 = vmatpush1.bf16.msra.mxu0 0
    %341 = vmatprep.subr.bf16.mxu0 0
    %342 = vmatpush1.bf16.msra.mxu0 0
    %343 = vmatprep.subr.bf16.mxu0 0
    %344 = vmatpush1.bf16.msra.mxu0 0
    %345 = vmatprep.subr.bf16.mxu0 0
    %346 = vmatpush1.bf16.msra.mxu0 0
    %347 = vmatprep.subr.bf16.mxu0 0
    %348 = vmatpush1.bf16.msra.mxu0 0
    %349 = vmatprep.subr.bf16.mxu0 0
    %350 = vmatpush1.bf16.msra.mxu0 0
    %351 = vmatprep.subr.bf16.mxu0 0
    %352 = vmatpush1.bf16.msra.mxu0 0
    %353 = vmatprep.subr.bf16.mxu0 0
    %354 = vmatpush1.bf16.msra.mxu0 %v272
    %355 = vmatprep.subr.bf16.mxu0 0
    %356 = vmatpush2.bf16.msra.mxu0 0
    %357 = vmatprep.subr.bf16.mxu0 0
    %358 = vmatpush2.bf16.msra.mxu0 0
    %359 = vmatprep.subr.bf16.mxu0 0
    %360 = vmatpush2.bf16.msra.mxu0 0
    %361 = vmatprep.subr.bf16.mxu0 0
    %362 = vmatpush2.bf16.msra.mxu0 0
    %363 = vmatprep.subr.bf16.mxu0 0
    %364 = vmatpush2.bf16.msra.mxu0 0
    %365 = vmatprep.subr.bf16.mxu0 0
    %366 = vmatpush2.bf16.msra.mxu0 0
    %367 = vmatprep.subr.bf16.mxu0 0
    %368 = vmatpush2.bf16.msra.mxu0 0
    %369 = vmatprep.subr.bf16.mxu0 0
    %370 = vmatpush2.bf16.msra.mxu0 0
    %371 = vmatprep.mubr.bf16.mxu0 0
    %372 = vmatmul.mubr.bf16.gmra.mxu0 %v337
    %v373 = vpop.f32.mrf.mxu0
    %v374 = vadd.f32 0.0, %v373
    %v375 = vpop.f32.mrf.mxu0
    %v376 = vpop.f32.mrf.mxu0
    %v377 = vpop.f32.mrf.mxu0
    %378 = vdwg.mxu0
    %v379 = vpack.c.bf16 %v374, %v374
    %381 = vrot.lane.b32.xlu0 %v134, 112
    %v382 = vpop.permute.xlu0 %381
    %384 = vrot.lane.b32.xlu0 %v213, 112
    %v385 = vpop.permute.xlu0 %384
    %v387 = vsel %vm157, %v382, 0
    %v390 = vsel %vm157, %v385, 0
    %392 = vmatprep.subr.bf16.mxu0 0
    %393 = vmatpush1.bf16.xpose.msra.mxu0 0
    %394 = vmatprep.subr.bf16.mxu0 0
    %395 = vmatpush1.bf16.xpose.msra.mxu0 0
    %396 = vmatprep.subr.bf16.mxu0 0
    %397 = vmatpush1.bf16.xpose.msra.mxu0 0
    %398 = vmatprep.subr.bf16.mxu0 0
    %399 = vmatpush1.bf16.xpose.msra.mxu0 0
    %400 = vmatprep.subr.bf16.mxu0 0
    %401 = vmatpush1.bf16.xpose.msra.mxu0 0
    %402 = vmatprep.subr.bf16.mxu0 0
    %403 = vmatpush1.bf16.xpose.msra.mxu0 0
    %404 = vmatprep.subr.bf16.mxu0 0
    %405 = vmatpush1.bf16.xpose.msra.mxu0 0
    %406 = vmatprep.subr.bf16.mxu0 0
    %407 = vmatpush1.bf16.xpose.msra.mxu0 %v390
    %408 = vmatprep.subr.bf16.mxu0 0
    %409 = vmatpush2.bf16.xpose.msra.mxu0 0
    %410 = vmatprep.subr.bf16.mxu0 0
    %411 = vmatpush2.bf16.xpose.msra.mxu0 0
    %412 = vmatprep.subr.bf16.mxu0 0
    %413 = vmatpush2.bf16.xpose.msra.mxu0 0
    %414 = vmatprep.subr.bf16.mxu0 0
    %415 = vmatpush2.bf16.xpose.msra.mxu0 0
    %416 = vmatprep.subr.bf16.mxu0 0
    %417 = vmatpush2.bf16.xpose.msra.mxu0 0
    %418 = vmatprep.subr.bf16.mxu0 0
    %419 = vmatpush2.bf16.xpose.msra.mxu0 0
    %420 = vmatprep.subr.bf16.mxu0 0
    %421 = vmatpush2.bf16.xpose.msra.mxu0 0
    %422 = vmatprep.subr.bf16.mxu0 0
    %423 = vmatpush2.bf16.xpose.msra.mxu0 0
    %424 = vmatprep.mubr.bf16.mxu0 0
    %425 = vmatmul.mubr.bf16.gmra.mxu0 %v387
    %v426 = vpop.f32.mrf.mxu0
    %v427 = vadd.f32 0.0, %v426
    %v428 = vpop.f32.mrf.mxu0
    %v429 = vpop.f32.mrf.mxu0
    %v430 = vpop.f32.mrf.mxu0
    %431 = vdwg.mxu0
    %v432 = vsel %vm157, %v427, -inf
    %433 = vmax.xlane.f32.xlu0 %v432
    %v434 = vpop.xlane.xlu0 %433
    %v435 = vsub.f32 %v427, %v434
    %v436 = vmul.f32 %v435, 1.442695
    %v437 = vpow.pop %v436
    %v438 = vsel %vm157, %v437, 0.0
    %439 = vadd.xlane.f32.xlu0 %v438
    %v440 = vpop.xlane.xlu0 %439
    %v441 = vrcp.pop %v440
    %v442 = vmul.f32 %v437, %v441
    %v443 = vpack.c.bf16 %v442, %v442
    %445 = vrot.lane.b32.xlu0 %v272, 112
    %v446 = vpop.permute.xlu0 %445
    %v449 = vsel %vm157, %v443, 0
    %451 = vmatprep.subr.bf16.mxu0 0
    %452 = vmatpush1.bf16.msra.mxu0 0
    %453 = vmatprep.subr.bf16.mxu0 0
    %454 = vmatpush1.bf16.msra.mxu0 0
    %455 = vmatprep.subr.bf16.mxu0 0
    %456 = vmatpush1.bf16.msra.mxu0 0
    %457 = vmatprep.subr.bf16.mxu0 0
    %458 = vmatpush1.bf16.msra.mxu0 0
    %459 = vmatprep.subr.bf16.mxu0 0
    %460 = vmatpush1.bf16.msra.mxu0 0
    %461 = vmatprep.subr.bf16.mxu0 0
    %462 = vmatpush1.bf16.msra.mxu0 0
    %463 = vmatprep.subr.bf16.mxu0 0
    %464 = vmatpush1.bf16.msra.mxu0 0
    %465 = vmatprep.subr.bf16.mxu0 0
    %466 = vmatpush1.bf16.msra.mxu0 %v446
    %467 = vmatprep.subr.bf16.mxu0 0
    %468 = vmatpush2.bf16.msra.mxu0 0
    %469 = vmatprep.subr.bf16.mxu0 0
    %470 = vmatpush2.bf16.msra.mxu0 0
    %471 = vmatprep.subr.bf16.mxu0 0
    %472 = vmatpush2.bf16.msra.mxu0 0
    %473 = vmatprep.subr.bf16.mxu0 0
    %474 = vmatpush2.bf16.msra.mxu0 0
    %475 = vmatprep.subr.bf16.mxu0 0
    %476 = vmatpush2.bf16.msra.mxu0 0
    %477 = vmatprep.subr.bf16.mxu0 0
    %478 = vmatpush2.bf16.msra.mxu0 0
    %479 = vmatprep.subr.bf16.mxu0 0
    %480 = vmatpush2.bf16.msra.mxu0 0
    %481 = vmatprep.subr.bf16.mxu0 0
    %482 = vmatpush2.bf16.msra.mxu0 0
    %483 = vmatprep.mubr.bf16.mxu0 0
    %484 = vmatmul.mubr.bf16.gmra.mxu0 %v449
    %v485 = vpop.f32.mrf.mxu0
    %v486 = vadd.f32 0.0, %v485
    %v487 = vpop.f32.mrf.mxu0
    %v488 = vpop.f32.mrf.mxu0
    %v489 = vpop.f32.mrf.mxu0
    %490 = vdwg.mxu0
    %v491 = vpack.c.bf16 %v486, %v486
    %v494 = vunpack.c.l.b16 %v276
    %v495 = vunpack.c.l.b16 %v277
    %v496 = vpack.c.b16 %v495, %v494
    %v499 = vsel %vm157, %v491, 0
    %501 = vmatprep.subr.bf16.mxu0 0
    %502 = vmatpush1.bf16.msra.mxu0 0
    %503 = vmatprep.subr.bf16.mxu0 0
    %504 = vmatpush1.bf16.msra.mxu0 0
    %505 = vmatprep.subr.bf16.mxu0 0
    %506 = vmatpush1.bf16.msra.mxu0 0
    %507 = vmatprep.subr.bf16.mxu0 0
    %508 = vmatpush1.bf16.msra.mxu0 0
    %509 = vmatprep.subr.bf16.mxu0 0
    %510 = vmatpush1.bf16.msra.mxu0 0
    %511 = vmatprep.subr.bf16.mxu0 0
    %512 = vmatpush1.bf16.msra.mxu0 0
    %513 = vmatprep.subr.bf16.mxu0 0
    %514 = vmatpush1.bf16.msra.mxu0 0
    %515 = vmatprep.subr.bf16.mxu0 0
    %516 = vmatpush1.bf16.msra.mxu0 %v496
    %517 = vmatprep.subr.bf16.mxu0 0
    %518 = vmatpush2.bf16.msra.mxu0 0
    %519 = vmatprep.subr.bf16.mxu0 0
    %520 = vmatpush2.bf16.msra.mxu0 0
    %521 = vmatprep.subr.bf16.mxu0 0
    %522 = vmatpush2.bf16.msra.mxu0 0
    %523 = vmatprep.subr.bf16.mxu0 0
    %524 = vmatpush2.bf16.msra.mxu0 0
    %525 = vmatprep.subr.bf16.mxu0 0
    %526 = vmatpush2.bf16.msra.mxu0 0
    %527 = vmatprep.subr.bf16.mxu0 0
    %528 = vmatpush2.bf16.msra.mxu0 0
    %529 = vmatprep.subr.bf16.mxu0 0
    %530 = vmatpush2.bf16.msra.mxu0 0
    %531 = vmatprep.subr.bf16.mxu0 0
    %532 = vmatpush2.bf16.msra.mxu0 0
    %533 = vmatprep.mubr.bf16.mxu0 0
    %534 = vmatmul.mubr.bf16.gmra.mxu0 %v499
    %v535 = vpop.f32.mrf.mxu0
    %v536 = vadd.f32 0.0, %v535
    %v537 = vpop.f32.mrf.mxu0
    %v538 = vpop.f32.mrf.mxu0
    %v539 = vpop.f32.mrf.mxu0
    %540 = vdwg.mxu0
    %v543 = vunpack.c.l.b16 %v274
    %v544 = vunpack.c.l.b16 %v275
    %v545 = vpack.c.b16 %v544, %v543
    %v548 = vsel %vm157, %v379, 0
    %550 = vmatprep.subr.bf16.mxu0 0
    %551 = vmatpush1.bf16.msra.mxu0 0
    %552 = vmatprep.subr.bf16.mxu0 0
    %553 = vmatpush1.bf16.msra.mxu0 0
    %554 = vmatprep.subr.bf16.mxu0 0
    %555 = vmatpush1.bf16.msra.mxu0 0
    %556 = vmatprep.subr.bf16.mxu0 0
    %557 = vmatpush1.bf16.msra.mxu0 0
    %558 = vmatprep.subr.bf16.mxu0 0
    %559 = vmatpush1.bf16.msra.mxu0 0
    %560 = vmatprep.subr.bf16.mxu0 0
    %561 = vmatpush1.bf16.msra.mxu0 0
    %562 = vmatprep.subr.bf16.mxu0 0
    %563 = vmatpush1.bf16.msra.mxu0 0
    %564 = vmatprep.subr.bf16.mxu0 0
    %565 = vmatpush1.bf16.msra.mxu0 %v545
    %566 = vmatprep.subr.bf16.mxu0 0
    %567 = vmatpush2.bf16.msra.mxu0 0
    %568 = vmatprep.subr.bf16.mxu0 0
    %569 = vmatpush2.bf16.msra.mxu0 0
    %570 = vmatprep.subr.bf16.mxu0 0
    %571 = vmatpush2.bf16.msra.mxu0 0
    %572 = vmatprep.subr.bf16.mxu0 0
    %573 = vmatpush2.bf16.msra.mxu0 0
    %574 = vmatprep.subr.bf16.mxu0 0
    %575 = vmatpush2.bf16.msra.mxu0 0
    %576 = vmatprep.subr.bf16.mxu0 0
    %577 = vmatpush2.bf16.msra.mxu0 0
    %578 = vmatprep.subr.bf16.mxu0 0
    %579 = vmatpush2.bf16.msra.mxu0 0
    %580 = vmatprep.subr.bf16.mxu0 0
    %581 = vmatpush2.bf16.msra.mxu0 0
    %582 = vmatprep.mubr.bf16.mxu0 0
    %583 = vmatmul.mubr.bf16.gmra.mxu0 %v548
    %v584 = vpop.f32.mrf.mxu0
    %v585 = vadd.f32 %v536, %v584
    %v586 = vpop.f32.mrf.mxu0
    %v587 = vpop.f32.mrf.mxu0
    %v588 = vpop.f32.mrf.mxu0
    %589 = vdwg.mxu0
    %590 = vst.msk [vmem:[#allocation8] sm:$0xff] %vm89, %v585
    %v591 = vrot.slane %v134, 4
    %v593 = vsel %vm157, %v591, 0
    %v596 = vsel %vm157, %v214, 0
    %598 = vmatprep.subr.bf16.mxu0 0
    %599 = vmatpush1.bf16.xpose.msra.mxu0 0
    %600 = vmatprep.subr.bf16.mxu0 0
    %601 = vmatpush1.bf16.xpose.msra.mxu0 0
    %602 = vmatprep.subr.bf16.mxu0 0
    %603 = vmatpush1.bf16.xpose.msra.mxu0 0
    %604 = vmatprep.subr.bf16.mxu0 0
    %605 = vmatpush1.bf16.xpose.msra.mxu0 0
    %606 = vmatprep.subr.bf16.mxu0 0
    %607 = vmatpush1.bf16.xpose.msra.mxu0 0
    %608 = vmatprep.subr.bf16.mxu0 0
    %609 = vmatpush1.bf16.xpose.msra.mxu0 0
    %610 = vmatprep.subr.bf16.mxu0 0
    %611 = vmatpush1.bf16.xpose.msra.mxu0 0
    %612 = vmatprep.subr.bf16.mxu0 0
    %613 = vmatpush1.bf16.xpose.msra.mxu0 %v596
    %614 = vmatprep.subr.bf16.mxu0 0
    %615 = vmatpush2.bf16.xpose.msra.mxu0 0
    %616 = vmatprep.subr.bf16.mxu0 0
    %617 = vmatpush2.bf16.xpose.msra.mxu0 0
    %618 = vmatprep.subr.bf16.mxu0 0
    %619 = vmatpush2.bf16.xpose.msra.mxu0 0
    %620 = vmatprep.subr.bf16.mxu0 0
    %621 = vmatpush2.bf16.xpose.msra.mxu0 0
    %622 = vmatprep.subr.bf16.mxu0 0
    %623 = vmatpush2.bf16.xpose.msra.mxu0 0
    %624 = vmatprep.subr.bf16.mxu0 0
    %625 = vmatpush2.bf16.xpose.msra.mxu0 0
    %626 = vmatprep.subr.bf16.mxu0 0
    %627 = vmatpush2.bf16.xpose.msra.mxu0 0
    %628 = vmatprep.subr.bf16.mxu0 0
    %629 = vmatpush2.bf16.xpose.msra.mxu0 0
    %630 = vmatprep.mubr.bf16.mxu0 0
    %631 = vmatmul.mubr.bf16.gmra.mxu0 %v593
    %v632 = vpop.f32.mrf.mxu0
    %v633 = vadd.f32 0.0, %v632
    %v634 = vpop.f32.mrf.mxu0
    %v635 = vpop.f32.mrf.mxu0
    %v636 = vpop.f32.mrf.mxu0
    %637 = vdwg.mxu0
    %v638 = vsel %vm157, %v633, -inf
    %639 = vmax.xlane.f32.xlu0 %v638
    %v640 = vpop.xlane.xlu0 %639
    %v641 = vsub.f32 %v633, %v640
    %v642 = vmul.f32 %v641, 1.442695
    %v643 = vpow.pop %v642
    %v644 = vsel %vm157, %v643, 0.0
    %645 = vadd.xlane.f32.xlu0 %v644
    %v646 = vpop.xlane.xlu0 %645
    %v647 = vrcp.pop %v646
    %v648 = vmul.f32 %v643, %v647
    %v649 = vpack.c.bf16 %v648, %v648
    %v651 = vsel %vm157, %v649, 0
    %653 = vmatprep.subr.bf16.mxu0 0
    %654 = vmatpush1.bf16.msra.mxu0 0
    %655 = vmatprep.subr.bf16.mxu0 0
    %656 = vmatpush1.bf16.msra.mxu0 0
    %657 = vmatprep.subr.bf16.mxu0 0
    %658 = vmatpush1.bf16.msra.mxu0 0
    %659 = vmatprep.subr.bf16.mxu0 0
    %660 = vmatpush1.bf16.msra.mxu0 0
    %661 = vmatprep.subr.bf16.mxu0 0
    %662 = vmatpush1.bf16.msra.mxu0 0
    %663 = vmatprep.subr.bf16.mxu0 0
    %664 = vmatpush1.bf16.msra.mxu0 0
    %665 = vmatprep.subr.bf16.mxu0 0
    %666 = vmatpush1.bf16.msra.mxu0 0
    %667 = vmatprep.subr.bf16.mxu0 0
    %668 = vmatpush1.bf16.msra.mxu0 %v273
    %669 = vmatprep.subr.bf16.mxu0 0
    %670 = vmatpush2.bf16.msra.mxu0 0
    %671 = vmatprep.subr.bf16.mxu0 0
    %672 = vmatpush2.bf16.msra.mxu0 0
    %673 = vmatprep.subr.bf16.mxu0 0
    %674 = vmatpush2.bf16.msra.mxu0 0
    %675 = vmatprep.subr.bf16.mxu0 0
    %676 = vmatpush2.bf16.msra.mxu0 0
    %677 = vmatprep.subr.bf16.mxu0 0
    %678 = vmatpush2.bf16.msra.mxu0 0
    %679 = vmatprep.subr.bf16.mxu0 0
    %680 = vmatpush2.bf16.msra.mxu0 0
    %681 = vmatprep.subr.bf16.mxu0 0
    %682 = vmatpush2.bf16.msra.mxu0 0
    %683 = vmatprep.subr.bf16.mxu0 0
    %684 = vmatpush2.bf16.msra.mxu0 0
    %685 = vmatprep.mubr.bf16.mxu0 0
    %686 = vmatmul.mubr.bf16.gmra.mxu0 %v651
    %v687 = vpop.f32.mrf.mxu0
    %v688 = vadd.f32 0.0, %v687
    %v689 = vpop.f32.mrf.mxu0
    %v690 = vpop.f32.mrf.mxu0
    %v691 = vpop.f32.mrf.mxu0
    %692 = vdwg.mxu0
    %v693 = vpack.c.bf16 %v688, %v688
    %694 = vrot.lane.b32.xlu0 %v591, 112
    %v695 = vpop.permute.xlu0 %694
    %697 = vrot.lane.b32.xlu0 %v214, 112
    %v698 = vpop.permute.xlu0 %697
    %v700 = vsel %vm157, %v695, 0
    %v703 = vsel %vm157, %v698, 0
    %705 = vmatprep.subr.bf16.mxu0 0
    %706 = vmatpush1.bf16.xpose.msra.mxu0 0
    %707 = vmatprep.subr.bf16.mxu0 0
    %708 = vmatpush1.bf16.xpose.msra.mxu0 0
    %709 = vmatprep.subr.bf16.mxu0 0
    %710 = vmatpush1.bf16.xpose.msra.mxu0 0
    %711 = vmatprep.subr.bf16.mxu0 0
    %712 = vmatpush1.bf16.xpose.msra.mxu0 0
    %713 = vmatprep.subr.bf16.mxu0 0
    %714 = vmatpush1.bf16.xpose.msra.mxu0 0
    %715 = vmatprep.subr.bf16.mxu0 0
    %716 = vmatpush1.bf16.xpose.msra.mxu0 0
    %717 = vmatprep.subr.bf16.mxu0 0
    %718 = vmatpush1.bf16.xpose.msra.mxu0 0
    %719 = vmatprep.subr.bf16.mxu0 0
    %720 = vmatpush1.bf16.xpose.msra.mxu0 %v703
    %721 = vmatprep.subr.bf16.mxu0 0
    %722 = vmatpush2.bf16.xpose.msra.mxu0 0
    %723 = vmatprep.subr.bf16.mxu0 0
    %724 = vmatpush2.bf16.xpose.msra.mxu0 0
    %725 = vmatprep.subr.bf16.mxu0 0
    %726 = vmatpush2.bf16.xpose.msra.mxu0 0
    %727 = vmatprep.subr.bf16.mxu0 0
    %728 = vmatpush2.bf16.xpose.msra.mxu0 0
    %729 = vmatprep.subr.bf16.mxu0 0
    %730 = vmatpush2.bf16.xpose.msra.mxu0 0
    %731 = vmatprep.subr.bf16.mxu0 0
    %732 = vmatpush2.bf16.xpose.msra.mxu0 0
    %733 = vmatprep.subr.bf16.mxu0 0
    %734 = vmatpush2.bf16.xpose.msra.mxu0 0
    %735 = vmatprep.subr.bf16.mxu0 0
    %736 = vmatpush2.bf16.xpose.msra.mxu0 0
    %737 = vmatprep.mubr.bf16.mxu0 0
    %738 = vmatmul.mubr.bf16.gmra.mxu0 %v700
    %v739 = vpop.f32.mrf.mxu0
    %v740 = vadd.f32 0.0, %v739
    %v741 = vpop.f32.mrf.mxu0
    %v742 = vpop.f32.mrf.mxu0
    %v743 = vpop.f32.mrf.mxu0
    %744 = vdwg.mxu0
    %v745 = vsel %vm157, %v740, -inf
    %746 = vmax.xlane.f32.xlu0 %v745
    %v747 = vpop.xlane.xlu0 %746
    %v748 = vsub.f32 %v740, %v747
    %v749 = vmul.f32 %v748, 1.442695
    %v750 = vpow.pop %v749
    %v751 = vsel %vm157, %v750, 0.0
    %752 = vadd.xlane.f32.xlu0 %v751
    %v753 = vpop.xlane.xlu0 %752
    %v754 = vrcp.pop %v753
    %v755 = vmul.f32 %v750, %v754
    %v756 = vpack.c.bf16 %v755, %v755
    %758 = vrot.lane.b32.xlu0 %v273, 112
    %v759 = vpop.permute.xlu0 %758
    %v762 = vsel %vm157, %v756, 0
    %764 = vmatprep.subr.bf16.mxu0 0
    %765 = vmatpush1.bf16.msra.mxu0 0
    %766 = vmatprep.subr.bf16.mxu0 0
    %767 = vmatpush1.bf16.msra.mxu0 0
    %768 = vmatprep.subr.bf16.mxu0 0
    %769 = vmatpush1.bf16.msra.mxu0 0
    %770 = vmatprep.subr.bf16.mxu0 0
    %771 = vmatpush1.bf16.msra.mxu0 0
    %772 = vmatprep.subr.bf16.mxu0 0
    %773 = vmatpush1.bf16.msra.mxu0 0
    %774 = vmatprep.subr.bf16.mxu0 0
    %775 = vmatpush1.bf16.msra.mxu0 0
    %776 = vmatprep.subr.bf16.mxu0 0
    %777 = vmatpush1.bf16.msra.mxu0 0
    %778 = vmatprep.subr.bf16.mxu0 0
    %779 = vmatpush1.bf16.msra.mxu0 %v759
    %780 = vmatprep.subr.bf16.mxu0 0
    %781 = vmatpush2.bf16.msra.mxu0 0
    %782 = vmatprep.subr.bf16.mxu0 0
    %783 = vmatpush2.bf16.msra.mxu0 0
    %784 = vmatprep.subr.bf16.mxu0 0
    %785 = vmatpush2.bf16.msra.mxu0 0
    %786 = vmatprep.subr.bf16.mxu0 0
    %787 = vmatpush2.bf16.msra.mxu0 0
    %788 = vmatprep.subr.bf16.mxu0 0
    %789 = vmatpush2.bf16.msra.mxu0 0
    %790 = vmatprep.subr.bf16.mxu0 0
    %791 = vmatpush2.bf16.msra.mxu0 0
    %792 = vmatprep.subr.bf16.mxu0 0
    %793 = vmatpush2.bf16.msra.mxu0 0
    %794 = vmatprep.subr.bf16.mxu0 0
    %795 = vmatpush2.bf16.msra.mxu0 0
    %796 = vmatprep.mubr.bf16.mxu0 0
    %797 = vmatmul.mubr.bf16.gmra.mxu0 %v762
    %v798 = vpop.f32.mrf.mxu0
    %v799 = vadd.f32 0.0, %v798
    %v800 = vpop.f32.mrf.mxu0
    %v801 = vpop.f32.mrf.mxu0
    %v802 = vpop.f32.mrf.mxu0
    %803 = vdwg.mxu0
    %v804 = vpack.c.bf16 %v799, %v799
    %v806 = vsel %vm157, %v804, 0
    %808 = vmatprep.subr.bf16.mxu0 0
    %809 = vmatpush1.bf16.msra.mxu0 0
    %810 = vmatprep.subr.bf16.mxu0 0
    %811 = vmatpush1.bf16.msra.mxu0 0
    %812 = vmatprep.subr.bf16.mxu0 0
    %813 = vmatpush1.bf16.msra.mxu0 0
    %814 = vmatprep.subr.bf16.mxu0 0
    %815 = vmatpush1.bf16.msra.mxu0 0
    %816 = vmatprep.subr.bf16.mxu0 0
    %817 = vmatpush1.bf16.msra.mxu0 0
    %818 = vmatprep.subr.bf16.mxu0 0
    %819 = vmatpush1.bf16.msra.mxu0 0
    %820 = vmatprep.subr.bf16.mxu0 0
    %821 = vmatpush1.bf16.msra.mxu0 0
    %822 = vmatprep.subr.bf16.mxu0 0
    %823 = vmatpush1.bf16.msra.mxu0 %v496
    %824 = vmatprep.subr.bf16.mxu0 0
    %825 = vmatpush2.bf16.msra.mxu0 0
    %826 = vmatprep.subr.bf16.mxu0 0
    %827 = vmatpush2.bf16.msra.mxu0 0
    %828 = vmatprep.subr.bf16.mxu0 0
    %829 = vmatpush2.bf16.msra.mxu0 0
    %830 = vmatprep.subr.bf16.mxu0 0
    %831 = vmatpush2.bf16.msra.mxu0 0
    %832 = vmatprep.subr.bf16.mxu0 0
    %833 = vmatpush2.bf16.msra.mxu0 0
    %834 = vmatprep.subr.bf16.mxu0 0
    %835 = vmatpush2.bf16.msra.mxu0 0
    %836 = vmatprep.subr.bf16.mxu0 0
    %837 = vmatpush2.bf16.msra.mxu0 0
    %838 = vmatprep.subr.bf16.mxu0 0
    %839 = vmatpush2.bf16.msra.mxu0 0
    %840 = vmatprep.mubr.bf16.mxu0 0
    %841 = vmatmul.mubr.bf16.gmra.mxu0 %v806
    %v842 = vpop.f32.mrf.mxu0
    %v843 = vadd.f32 0.0, %v842
    %v844 = vpop.f32.mrf.mxu0
    %v845 = vpop.f32.mrf.mxu0
    %v846 = vpop.f32.mrf.mxu0
    %847 = vdwg.mxu0
    %v849 = vsel %vm157, %v693, 0
    %851 = vmatprep.subr.bf16.mxu0 0
    %852 = vmatpush1.bf16.msra.mxu0 0
    %853 = vmatprep.subr.bf16.mxu0 0
    %854 = vmatpush1.bf16.msra.mxu0 0
    %855 = vmatprep.subr.bf16.mxu0 0
    %856 = vmatpush1.bf16.msra.mxu0 0
    %857 = vmatprep.subr.bf16.mxu0 0
    %858 = vmatpush1.bf16.msra.mxu0 0
    %859 = vmatprep.subr.bf16.mxu0 0
    %860 = vmatpush1.bf16.msra.mxu0 0
    %861 = vmatprep.subr.bf16.mxu0 0
    %862 = vmatpush1.bf16.msra.mxu0 0
    %863 = vmatprep.subr.bf16.mxu0 0
    %864 = vmatpush1.bf16.msra.mxu0 0
    %865 = vmatprep.subr.bf16.mxu0 0
    %866 = vmatpush1.bf16.msra.mxu0 %v545
    %867 = vmatprep.subr.bf16.mxu0 0
    %868 = vmatpush2.bf16.msra.mxu0 0
    %869 = vmatprep.subr.bf16.mxu0 0
    %870 = vmatpush2.bf16.msra.mxu0 0
    %871 = vmatprep.subr.bf16.mxu0 0
    %872 = vmatpush2.bf16.msra.mxu0 0
    %873 = vmatprep.subr.bf16.mxu0 0
    %874 = vmatpush2.bf16.msra.mxu0 0
    %875 = vmatprep.subr.bf16.mxu0 0
    %876 = vmatpush2.bf16.msra.mxu0 0
    %877 = vmatprep.subr.bf16.mxu0 0
    %878 = vmatpush2.bf16.msra.mxu0 0
    %879 = vmatprep.subr.bf16.mxu0 0
    %880 = vmatpush2.bf16.msra.mxu0 0
    %881 = vmatprep.subr.bf16.mxu0 0
    %882 = vmatpush2.bf16.msra.mxu0 0
    %883 = vmatprep.mubr.bf16.mxu0 0
    %884 = vmatmul.mubr.bf16.gmra.mxu0 %v849
    %v885 = vpop.f32.mrf.mxu0
    %v886 = vadd.f32 %v843, %v885
    %v887 = vpop.f32.mrf.mxu0
    %v888 = vpop.f32.mrf.mxu0
    %v889 = vpop.f32.mrf.mxu0
    %890 = vdwg.mxu0
    %891 = vst.msk [vmem:[#allocation8 + $0x8] sm:$0xff] %vm89, %v886
    // Predicated region
    $region38: #{tpu_custom_call.1} parent=1 // pred_check
      _
    $region39: #{tpu_custom_call.1} parent=1 // pred_check_branch
      %893 = sbr.rel (0) target = $region41
    $region40: #{tpu_custom_call.1} parent=1 // pred_region
      %s895 = ssub.s32 256, 256
      %896 = vsyncadd [#allocation4], %s895
      %s897 = sshll.u32 [#allocation8], 4
      %s898 = int_to_ptr.vmem [resolvable:$true] %s897
      %903 = dma.vmem_to_hbm [thread:$0]  %s898, 256, %s6, [#allocation4], 128, 128, 8
    $region41: #{tpu_custom_call.1} parent=1 // pred_fallthru
      _
    // Predicated region
    $region42: #{tpu_custom_call.1} parent=1 // pred_check
      _
    $region43: #{tpu_custom_call.1} parent=1 // pred_check_branch
      %905 = sbr.rel (0) target = $region45
    $region44: #{tpu_custom_call.1} parent=1 // pred_region
      %906 = dma.done [#allocation4], 256
    $region45: #{tpu_custom_call.1} parent=1 // pred_fallthru
      _
    %907 = vsyncpa [#allocation3], 1
    %908 = vsyncpa [#allocation6], 1
    %909 = vsyncpa [#allocation4], 1

</llo_original>
